<compile_context>
chip_gen: v7x
topology: tpu7x:2x2x1
jax: 0.10.0
libtpu: 0.0.40
codegen_flags: <defaults>
</compile_context>

<pallas_src>
import functools

import jax
import jax.numpy as jnp
from jax.experimental import pallas as pl
from jax.experimental.pallas import tpu as pltpu


def _round_up(n, m):
    return ((n + m - 1) // m) * m


def _fp_forward_kernel(zx_ref, h_ref, whh_ref, *out_refs,
                       compute_dtype, write_next):
    """One B-tile of the VanillaRNN fixed-point forward pass.

    zx_ref : (TILE_B, H_pad)   precomputed x @ W_ih^T + (b_ih + b_hh)  (compute_dtype)
    h_ref  : (TILE_B, H_pad)   candidate fixed-point states            (f32)
    whh_ref: (H_pad, H_pad)    resident packed W_hh^T                  (compute_dtype)
    out_refs:
      [next_ref] : (TILE_B, H_pad)  h_next = tanh(h @ W_hh^T + z_x)   (optional)
      speed_ref  : (1, 1, TILE_B)   lane-dense 0.5 * ||h_next - h||^2 per point
    """
    h = h_ref[...]                                                 # f32

    # Single MXU push against the resident weight (stored already in compute_dtype,
    # so no per-step weight cast); f32 accumulation regardless of operand dtype.
    z = jnp.dot(h.astype(compute_dtype), whh_ref[...],
                preferred_element_type=jnp.float32)
    z = z + zx_ref[...].astype(jnp.float32)
    h_next = jnp.tanh(z)                                           # EUP, f32

    if write_next:
        next_ref, speed_ref = out_refs
        next_ref[...] = h_next.astype(next_ref.dtype)
    else:
        speed_ref = out_refs[0]

    diff = h_next - h                                              # f32 diff/reduce
    s = 0.5 * jnp.sum(diff * diff, axis=1)                         # (TILE_B,)
    speed_ref[...] = s[None, None, :]                              # lane-dense store


def pack_fixed_point_operands(x, w_ih, w_hh, b_ih, b_hh, *,
                              compute_dtype=jnp.float32):
    """Pack the frozen operands ONCE, outside the Adam fixed-point loop.

    x: (B, D_in) input, w_ih: (H, D_in), w_hh: (H, H), b_ih/b_hh: (H,)
    Returns:
      z_x    : (B, H_pad)      x @ W_ih^T + (b_ih + b_hh), zero-padded to lane multiple
      w_hh_t : (H_pad, H_pad)  W_hh^T, zero-padded to lane multiple
    Both stored in `compute_dtype` (f32 default; bf16 halves resident VMEM/HBM bytes
    and feeds the MXU directly on v6e/v7x).
    """
    H, _ = w_ih.shape
    assert w_hh.shape == (H, H)
    h_pad = _round_up(H, 128)                       # lane-align the feature axis

    z_x = (x.astype(jnp.float32) @ w_ih.T.astype(jnp.float32)
           + (b_ih + b_hh).astype(jnp.float32))                      # (B, H)
    z_x = jnp.pad(z_x, ((0, 0), (0, h_pad - H))).astype(compute_dtype)

    w_hh_t = jnp.zeros((h_pad, h_pad), jnp.float32)
    w_hh_t = w_hh_t.at[:H, :H].set(w_hh.T.astype(jnp.float32))
    w_hh_t = w_hh_t.astype(compute_dtype)
    return z_x, w_hh_t


def fixed_point_forward(states, z_x, w_hh_t, *, current_states=None,
                        compute_next_state=True,
                        next_state_dtype=jnp.float32,
                        tile_b_target=512):
    """Mirrors fixedPointNetwork.forward (+ get_speeds' per-point speed).

    states:  (B, H)  the nn.Parameter being optimized
    z_x, w_hh_t:     from pack_fixed_point_operands (computed once; x/weights frozen)
    current_states:  optional (B, H) override (the `currentStates` argument)
    compute_next_state: False -> speeds-only hot-loop mode (skips h_next writeback)
    tile_b_target:   target points-axis tile; the actual tile is derived from B so
                     the edge tile is never mostly padding.
    Returns (next_state (B, H) or None, speeds (B,) f32).
    """
    h = states if current_states is None else current_states
    B, H = h.shape
    h_pad_dim = w_hh_t.shape[0]
    compute_dtype = w_hh_t.dtype
    assert z_x.shape[0] == B and z_x.shape[1] == h_pad_dim

    h = h.astype(jnp.float32)
    if h_pad_dim != H:
        h = jnp.pad(h, ((0, 0), (0, h_pad_dim - H)))

    # Points-axis tiling: sublane-align to 8, never pad B up to a full target tile.
    b8 = _round_up(B, 8)
    num_tiles = max(1, -(-b8 // max(8, int(tile_b_target))))
    tile_b = _round_up(-(-b8 // num_tiles), 8)
    b_pad = num_tiles * tile_b
    z_x_p = z_x
    if b_pad != B:
        h = jnp.pad(h, ((0, b_pad - B), (0, 0)))
        z_x_p = jnp.pad(z_x, ((0, b_pad - B), (0, 0)))

    # Explicit VMEM budget: double-buffered tiles + resident weight + headroom.
    isz_c = jnp.dtype(compute_dtype).itemsize
    isz_o = jnp.dtype(next_state_dtype).itemsize
    tile_elems = tile_b * h_pad_dim
    vmem_needed = (h_pad_dim * h_pad_dim * isz_c                    # resident W_hh^T
                   + 2 * tile_elems * isz_c                         # z_x (2-deep)
                   + 2 * tile_elems * 4                             # h   (2-deep, f32)
                   + (2 * tile_elems * isz_o if compute_next_state else 0)
                   + 2 * tile_b * 4)                                # speeds
    vmem_limit = int(min(max(2 * vmem_needed, 32 << 20), 64 << 20))
    vmem_limit = max(vmem_limit, int(vmem_needed) + (8 << 20))

    flops = 2 * b_pad * h_pad_dim * h_pad_dim + 5 * b_pad * h_pad_dim
    bytes_accessed = (h_pad_dim * h_pad_dim * isz_c
                      + b_pad * h_pad_dim * (isz_c + 4
                                             + (isz_o if compute_next_state else 0))
                      + b_pad * 4)

    kernel = functools.partial(_fp_forward_kernel,
                               compute_dtype=compute_dtype,
                               write_next=compute_next_state)

    in_specs = [
        pl.BlockSpec((tile_b, h_pad_dim), lambda i: (i, 0)),        # z_x, pipelined
        pl.BlockSpec((tile_b, h_pad_dim), lambda i: (i, 0)),        # h, pipelined
        pl.BlockSpec((h_pad_dim, h_pad_dim), lambda i: (0, 0)),     # W_hh^T, resident
    ]
    speed_shape = jax.ShapeDtypeStruct((num_tiles, 1, tile_b), jnp.float32)
    speed_spec = pl.BlockSpec((1, 1, tile_b), lambda i: (i, 0, 0))  # lane-dense speeds
    if compute_next_state:
        out_shape = (jax.ShapeDtypeStruct((b_pad, h_pad_dim), next_state_dtype),
                     speed_shape)
        out_specs = (pl.BlockSpec((tile_b, h_pad_dim), lambda i: (i, 0)),
                     speed_spec)
    else:
        out_shape = (speed_shape,)
        out_specs = (speed_spec,)

    outs = pl.pallas_call(
        kernel,
        grid=(num_tiles,),
        out_shape=out_shape,
        in_specs=in_specs,
        out_specs=out_specs,
        compiler_params=pltpu.CompilerParams(
            dimension_semantics=("parallel",),                      # megacore on v7x
            vmem_limit_bytes=vmem_limit,
        ),
        cost_estimate=pl.CostEstimate(
            flops=flops,
            transcendentals=b_pad * h_pad_dim,
            bytes_accessed=bytes_accessed,
        ),
    )(z_x_p, h, w_hh_t)

    if compute_next_state:
        next_state = outs[0][:B, :H]
        speeds = outs[1]
    else:
        next_state = None
        speeds = outs[0]
    speeds = speeds.reshape(b_pad)[:B]
    return next_state, speeds


def _reference(x, states, w_ih, w_hh, b_ih, b_hh):
    h_next = jnp.tanh(x @ w_ih.T + states @ w_hh.T + b_ih + b_hh)
    speeds = 0.5 * jnp.sum((h_next - states) ** 2, axis=1)
    return h_next, speeds


if __name__ == "__main__":
    # Small, deterministic setup: 8 candidate fixed points, 16-dim input, 32-dim hidden.
    key = jax.random.PRNGKey(0)
    k_x, k_s, k_wih, k_whh, k_bih, k_bhh = jax.random.split(key, 6)

    B, D_in, H = 8, 16, 32  # num_points, input_dim, hidden_dim

    x = jax.random.normal(k_x, (B, D_in), dtype=jnp.float32)
    init_states = jax.random.normal(k_s, (B, H), dtype=jnp.float32)  # self.states
    w_ih = 0.1 * jax.random.normal(k_wih, (H, D_in), dtype=jnp.float32)
    w_hh = 0.1 * jax.random.normal(k_whh, (H, H), dtype=jnp.float32)
    b_ih = 0.1 * jax.random.normal(k_bih, (H,), dtype=jnp.float32)
    b_hh = 0.1 * jax.random.normal(k_bhh, (H,), dtype=jnp.float32)

    # x and the RNN weights are frozen during the fixed-point search: hoist the
    # input projection and pack W_hh^T exactly once, outside any optimization loop.
    z_x, w_hh_t = pack_fixed_point_operands(x, w_ih, w_hh, b_ih, b_hh)

    fwd = jax.jit(functools.partial(fixed_point_forward, compute_next_state=True))
    speeds_only = jax.jit(functools.partial(fixed_point_forward,
                                            compute_next_state=False))

    # forward() + get_speeds() with internal state = self.states
    next_state, speeds = fwd(init_states, z_x, w_hh_t)
    next_state = jax.block_until_ready(next_state)
    speeds = jax.block_until_ready(speeds)

    # Adam hot-loop mode: speeds only, no h_next writeback.
    _, speeds_hot = speeds_only(init_states, z_x, w_hh_t)
    speeds_hot = jax.block_until_ready(speeds_hot)

    # forward(x, currentStates=...) override path (used for speed comparisons).
    other_states = jax.random.normal(jax.random.PRNGKey(1), (B, H), dtype=jnp.float32)
    next_other, speeds_other = fwd(init_states, z_x, w_hh_t,
                                   current_states=other_states)
    next_other = jax.block_until_ready(next_other)

    ref_next, ref_speeds = _reference(x, init_states, w_ih, w_hh, b_ih, b_hh)
    ref_next_o, ref_speeds_o = _reference(x, other_states, w_ih, w_hh, b_ih, b_hh)
    assert jnp.allclose(next_state, ref_next, atol=1e-5, rtol=1e-5)
    assert jnp.allclose(speeds, ref_speeds, atol=1e-5, rtol=1e-5)
    assert jnp.allclose(speeds_hot, ref_speeds, atol=1e-5, rtol=1e-5)
    assert jnp.allclose(next_other, ref_next_o, atol=1e-5, rtol=1e-5)
    assert jnp.allclose(speeds_other, ref_speeds_o, atol=1e-5, rtol=1e-5)

    # TODO(synk): find_fixed_points' Adam loop (autodiff + optimizer state) stays in
    # plain JAX/optax; pallas_call is not differentiable by default, so a
    # jax.custom_vjp with the analytic backward
    #   grad_h = ((h_next - h) * (1 - h_next^2)) @ W_hh - (h_next - h)
    # is required before this kernel can sit inside the optimization loop.

    print("KERNEL_OK")
</pallas_src>

<mosaic_0001>
module attributes {stable_mosaic.version = 11 : i64} {
  func.func @_fp_forward_kernel(%arg0: i32, %arg1: memref<8x128xf32, #tpu.memory_space<vmem>>, %arg2: memref<8x128xf32, #tpu.memory_space<vmem>>, %arg3: memref<128x128xf32, #tpu.memory_space<vmem>>, %arg4: memref<8x128xf32, #tpu.memory_space<vmem>>, %arg5: memref<1x1x8xf32, #tpu.memory_space<vmem>>) attributes {dimension_semantics = [#tpu.dimension_semantics<parallel>], iteration_bounds = array<i64: 1>, scalar_prefetch = 0 : i64, scratch_operands = 0 : i64, tpu.core_type = #tpu.core_type<tc>, window_params = [{transform_indices = @transform_0, window_bounds = array<i64: 8, 128>}, {transform_indices = @transform_1, window_bounds = array<i64: 8, 128>}, {pipeline_mode = #tpu.pipeline_mode<synchronous>, transform_indices = @transform_2, window_bounds = array<i64: 128, 128>}, {transform_indices = @transform_3, window_bounds = array<i64: 8, 128>}, {transform_indices = @transform_4, window_bounds = array<i64: 1, 1, 8>}]} {
    %c0 = arith.constant 0 : index
    %c0_0 = arith.constant 0 : index
    %0 = vector.load %arg2[%c0, %c0_0] : memref<8x128xf32, #tpu.memory_space<vmem>>, vector<8x128xf32>
    %c0_1 = arith.constant 0 : index
    %c0_2 = arith.constant 0 : index
    %1 = vector.load %arg3[%c0_1, %c0_2] : memref<128x128xf32, #tpu.memory_space<vmem>>, vector<128x128xf32>
    %cst = arith.constant dense<0.000000e+00> : vector<8x128xf32>
    %2 = tpu.matmul %0, %1, %cst {dimension_numbers = #tpu.dot_dimension_numbers<[1], [0], [0], [1], [0, 0, 1, 1], [], []>} : vector<8x128xf32>, vector<128x128xf32>, vector<8x128xf32> -> vector<8x128xf32>
    %c0_3 = arith.constant 0 : index
    %c0_4 = arith.constant 0 : index
    %3 = vector.load %arg1[%c0_3, %c0_4] : memref<8x128xf32, #tpu.memory_space<vmem>>, vector<8x128xf32>
    %4 = arith.addf %2, %3 : vector<8x128xf32>
    %5 = math.tanh %4 : vector<8x128xf32>
    %c0_5 = arith.constant 0 : index
    %c0_6 = arith.constant 0 : index
    %6 = vector.load %arg4[%c0_5, %c0_6] : memref<8x128xf32, #tpu.memory_space<vmem>>, vector<8x128xf32>
    tpu.vector_store %arg4[%c0_5, %c0_6], %5 {strides = array<i32>} : memref<8x128xf32, #tpu.memory_space<vmem>>, vector<8x128xf32>,
    %7 = arith.subf %5, %0 : vector<8x128xf32>
    %8 = arith.mulf %7, %7 : vector<8x128xf32>
    %cst_7 = arith.constant dense<0.000000e+00> : vector<8xf32>
    %9 = vector.multi_reduction <add>, %8, %cst_7 [1] : vector<8x128xf32> to vector<8xf32>
    %cst_8 = arith.constant 5.000000e-01 : f32
    %10 = vector.broadcast %cst_8 : f32 to vector<8xf32>
    %11 = arith.mulf %10, %9 : vector<8xf32>
    %12 = vector.shape_cast %11 : vector<8xf32> to vector<1x1x8xf32>
    %c0_9 = arith.constant 0 : index
    %c0_10 = arith.constant 0 : index
    %c0_11 = arith.constant 0 : index
    %13 = vector.load %arg5[%c0_9, %c0_10, %c0_11] : memref<1x1x8xf32, #tpu.memory_space<vmem>>, vector<1x1x8xf32>
    tpu.vector_store %arg5[%c0_9, %c0_10, %c0_11], %12 {strides = array<i32>} : memref<1x1x8xf32, #tpu.memory_space<vmem>>, vector<1x1x8xf32>,
    return
  }
  func.func @transform_0(%arg0: i32) -> (i32, i32) {
    %c0_i32 = arith.constant 0 : i32
    %c0_i32_0 = arith.constant 0 : i32
    return %arg0, %c0_i32 : i32, i32
  }
  func.func @transform_1(%arg0: i32) -> (i32, i32) {
    %c0_i32 = arith.constant 0 : i32
    %c0_i32_0 = arith.constant 0 : i32
    return %arg0, %c0_i32 : i32, i32
  }
  func.func @transform_2(%arg0: i32) -> (i32, i32) {
    %c0_i32 = arith.constant 0 : i32
    %c0_i32_0 = arith.constant 0 : i32
    %c0_i32_1 = arith.constant 0 : i32
    return %c0_i32, %c0_i32_0 : i32, i32
  }
  func.func @transform_3(%arg0: i32) -> (i32, i32) {
    %c0_i32 = arith.constant 0 : i32
    %c0_i32_0 = arith.constant 0 : i32
    return %arg0, %c0_i32 : i32, i32
  }
  func.func @transform_4(%arg0: i32) -> (i32, i32, i32) {
    %c0_i32 = arith.constant 0 : i32
    %c0_i32_0 = arith.constant 0 : i32
    %c0_i32_1 = arith.constant 0 : i32
    return %arg0, %c0_i32, %c0_i32_0 : i32, i32, i32
  }
}

</mosaic_0001>

<llo_original>
// kernel: fixed_point_forward.1
$region0: #{fixed_point_forward.1}
  #allocation0 [shape = 'u32[]', space=smem, size = 0x4, offset = 0x4, fixed_abs, tag = 'smem constant byte address 0x4 - core index']
  #allocation1 [shape = 'u32[144,128]{1,0:T(1,128)}', space=vmem, size = 0x12000, scoped, tag = 'internal scratch']
  %s0 = inlined_call_operand.vmem [shape: f32[8,128], index: 0, kind: input, shape index: {}]
  %s1 = inlined_call_operand.vmem [shape: f32[8,128], index: 1, kind: input, shape index: {}]
  %s2 = inlined_call_operand.hbm [shape: f32[128,128], index: 2, kind: input, shape index: {}]
  %s3 = inlined_call_operand.hbm [shape: f32[8,128], index: 3, kind: output, shape index: {0}]
  %s4 = inlined_call_operand.hbm [shape: f32[1,1,8], index: 4, kind: output, shape index: {1}]
  %5 = xla_tuple %s3, %s4
  %s6 = sld [smem:[#allocation0]]
  $region34: #{fixed_point_forward.1} parent=0
    _
  %s8 = ssub.s32 1, %s6
  %s9 = scalar_select 0, %s8, %s6
  $region1: #{fixed_point_forward.1} parent=0
    #allocation2 [shape = 'u8[65536]{0}', space=vmem, size = 0x10000, scoped, tag = 'input window, operand 2, single buffered']
    #allocation3 [shape = 's32[1]{0}', space=sflag, size = 0x4, scoped, tag = 'scoped memory for fixed_point_forward.1']
    #allocation4 [shape = 's32[1]{0}', space=sflag, size = 0x4, scoped, tag = 'scoped memory for fixed_point_forward.1']
    #allocation5 [shape = 'u8[4096]{0}', space=vmem, size = 0x1000, scoped, tag = 'output window, operand 0, single buffered']
    #allocation6 [shape = 'u8[512]{0}', space=vmem, size = 0x400, scoped, tag = 'output window, operand 1, single buffered']
    #allocation7 [shape = 's32[1]{0}', space=sflag, size = 0x4, scoped, tag = 'scoped memory for fixed_point_forward.1']
    %10 = vsyncpa [#allocation3], 0
    %11 = vsyncpa [#allocation4], 0
    %12 = vsyncpa [#allocation7], 0
    // Predicated region
    $region2: #{fixed_point_forward.1} parent=1 // pred_check
      _
    $region3: #{fixed_point_forward.1} parent=1 // pred_check_branch
      %14 = sbr.rel (0) target = $region5
    $region4: #{fixed_point_forward.1} parent=1 // pred_region
      _
    $region5: #{fixed_point_forward.1} parent=1 // pred_fallthru
      _
    // Predicated region
    $region6: #{fixed_point_forward.1} parent=1 // pred_check
      _
    $region7: #{fixed_point_forward.1} parent=1 // pred_check_branch
      %16 = sbr.rel (0) target = $region9
    $region8: #{fixed_point_forward.1} parent=1 // pred_region
      _
    $region9: #{fixed_point_forward.1} parent=1 // pred_fallthru
      _
    // Predicated region
    $region10: #{fixed_point_forward.1} parent=1 // pred_check
      _
    $region11: #{fixed_point_forward.1} parent=1 // pred_check_branch
      %18 = sbr.rel (0) target = $region13
    $region12: #{fixed_point_forward.1} parent=1 // pred_region
      %s20 = ssub.s32 2048, 2048
      %21 = vsyncadd [#allocation3], %s20
      %s22 = sshll.u32 [#allocation2], 4
      %s23 = int_to_ptr.vmem [resolvable:$true] %s22
      %28 = dma.hbm_to_vmem [thread:$0]  %s2, 2048, %s23, [#allocation3], 128, 128, 8
    $region13: #{fixed_point_forward.1} parent=1 // pred_fallthru
      _
    // Predicated region
    $region14: #{fixed_point_forward.1} parent=1 // pred_check
      _
    $region15: #{fixed_point_forward.1} parent=1 // pred_check_branch
      %30 = sbr.rel (0) target = $region17
    $region16: #{fixed_point_forward.1} parent=1 // pred_region
      %31 = dma.done [#allocation3], 2048
    $region17: #{fixed_point_forward.1} parent=1 // pred_fallthru
      _
    %v32 = vld [vmem:[%s1] sm:$0xff]
    %v33 = vld [vmem:[#allocation2] sm:$0xff]
    %v34 = vld [vmem:[#allocation2 + $0x8] sm:$0xff]
    %v35 = vld [vmem:[#allocation2 + $0x10] sm:$0xff]
    %v36 = vld [vmem:[#allocation2 + $0x18] sm:$0xff]
    %v37 = vld [vmem:[#allocation2 + $0x20] sm:$0xff]
    %v38 = vld [vmem:[#allocation2 + $0x28] sm:$0xff]
    %v39 = vld [vmem:[#allocation2 + $0x30] sm:$0xff]
    %v40 = vld [vmem:[#allocation2 + $0x38] sm:$0xff]
    %v41 = vld [vmem:[#allocation2 + $0x40] sm:$0xff]
    %v42 = vld [vmem:[#allocation2 + $0x48] sm:$0xff]
    %v43 = vld [vmem:[#allocation2 + $0x50] sm:$0xff]
    %v44 = vld [vmem:[#allocation2 + $0x58] sm:$0xff]
    %v45 = vld [vmem:[#allocation2 + $0x60] sm:$0xff]
    %v46 = vld [vmem:[#allocation2 + $0x68] sm:$0xff]
    %v47 = vld [vmem:[#allocation2 + $0x70] sm:$0xff]
    %v48 = vld [vmem:[#allocation2 + $0x78] sm:$0xff]
    %v49 = vld [vmem:[%s0] sm:$0xff]
    %50 = vmatprep.subr.mxu0 0.0
    %51 = vmatpush1.msra.mxu0 %v33
    %52 = vmatprep.subr.mxu0 0.0
    %53 = vmatpush1.msra.mxu0 %v34
    %54 = vmatprep.subr.mxu0 0.0
    %55 = vmatpush1.msra.mxu0 %v35
    %56 = vmatprep.subr.mxu0 0.0
    %57 = vmatpush1.msra.mxu0 %v36
    %58 = vmatprep.subr.mxu0 0.0
    %59 = vmatpush1.msra.mxu0 %v37
    %60 = vmatprep.subr.mxu0 0.0
    %61 = vmatpush1.msra.mxu0 %v38
    %62 = vmatprep.subr.mxu0 0.0
    %63 = vmatpush1.msra.mxu0 %v39
    %64 = vmatprep.subr.mxu0 0.0
    %65 = vmatpush1.msra.mxu0 %v40
    %66 = vmatprep.subr.mxu0 0.0
    %67 = vmatpush1.msra.mxu0 %v41
    %68 = vmatprep.subr.mxu0 0.0
    %69 = vmatpush1.msra.mxu0 %v42
    %70 = vmatprep.subr.mxu0 0.0
    %71 = vmatpush1.msra.mxu0 %v43
    %72 = vmatprep.subr.mxu0 0.0
    %73 = vmatpush1.msra.mxu0 %v44
    %74 = vmatprep.subr.mxu0 0.0
    %75 = vmatpush1.msra.mxu0 %v45
    %76 = vmatprep.subr.mxu0 0.0
    %77 = vmatpush1.msra.mxu0 %v46
    %78 = vmatprep.subr.mxu0 0.0
    %79 = vmatpush1.msra.mxu0 %v47
    %80 = vmatprep.subr.mxu0 0.0
    %81 = vmatpush1.msra.mxu0 %v48
    %82 = vmatprep.subr.mxu0 0.0
    %83 = vmatpush1.msra.mxu0 0.0
    %84 = vmatprep.subr.mxu0 0.0
    %85 = vmatpush1.msra.mxu0 0.0
    %86 = vmatprep.subr.mxu0 0.0
    %87 = vmatpush1.msra.mxu0 0.0
    %88 = vmatprep.subr.mxu0 0.0
    %89 = vmatpush1.msra.mxu0 0.0
    %90 = vmatprep.subr.mxu0 0.0
    %91 = vmatpush1.msra.mxu0 0.0
    %92 = vmatprep.subr.mxu0 0.0
    %93 = vmatpush1.msra.mxu0 0.0
    %94 = vmatprep.subr.mxu0 0.0
    %95 = vmatpush1.msra.mxu0 0.0
    %96 = vmatprep.subr.mxu0 0.0
    %97 = vmatpush1.msra.mxu0 0.0
    %98 = vmatprep.subr.mxu0 0.0
    %99 = vmatpush1.msra.mxu0 0.0
    %100 = vmatprep.subr.mxu0 0.0
    %101 = vmatpush1.msra.mxu0 0.0
    %102 = vmatprep.subr.mxu0 0.0
    %103 = vmatpush1.msra.mxu0 0.0
    %104 = vmatprep.subr.mxu0 0.0
    %105 = vmatpush1.msra.mxu0 0.0
    %106 = vmatprep.subr.mxu0 0.0
    %107 = vmatpush1.msra.mxu0 0.0
    %108 = vmatprep.subr.mxu0 0.0
    %109 = vmatpush1.msra.mxu0 0.0
    %110 = vmatprep.subr.mxu0 0.0
    %111 = vmatpush1.msra.mxu0 0.0
    %112 = vmatprep.subr.mxu0 0.0
    %113 = vmatpush1.msra.mxu0 0.0
    %114 = vmatprep.mubr.f32.mxu0 0.0
    %115 = vmatmul.mubr.f32.gmra.mrb[0].mxu0 %v32
    %v116 = vpop.f32.mrb[0].mxu0
    %v117 = vadd.f32 %v49, %v116
    %v118 = vpop.f32.mrb[0].mxu0
    %119 = vdwg.mxu0
    %v120 = vtanh.pop %v117
    %121 = vst [vmem:[#allocation5] sm:$0xff] %v120
    %v122 = vsub.f32 %v120, %v32
    %v123 = vmul.f32 %v122, %v122
    %124 = vadd.xlane.f32.xlu0 %v123
    %v125 = vpop.xlane.xlu0 %124
    %v126 = vmul.f32 %v125, 0.5
    %v128 = vlaneseq
    %v129 = vand.u32 %v128, 127
    %v130 = vlaneseq
    %v131 = vshrl.u32 %v130, 7
    %v132 = vsub.s32 %v129, %v131
    %v133 = vrot.slane %v126, %v132
    %vm135 = vcmask 57344
    %136 = vst.msk [vmem:[#allocation6] sm:$0x1] %vm135, %v133
    // Predicated region
    $region18: #{fixed_point_forward.1} parent=1 // pred_check
      _
    $region19: #{fixed_point_forward.1} parent=1 // pred_check_branch
      %138 = sbr.rel (0) target = $region21
    $region20: #{fixed_point_forward.1} parent=1 // pred_region
      %s140 = ssub.s32 128, 128
      %141 = vsyncadd [#allocation4], %s140
      %s143 = sshll.u32 [#allocation5], 4
      %s144 = int_to_ptr.vmem [resolvable:$true] %s143
      %146 = dma.vmem_to_hbm [thread:$0]  %s144, 128, %s3, [#allocation4]
    $region21: #{fixed_point_forward.1} parent=1 // pred_fallthru
      _
    // Predicated region
    $region22: #{fixed_point_forward.1} parent=1 // pred_check
      _
    $region23: #{fixed_point_forward.1} parent=1 // pred_check_branch
      %148 = sbr.rel (0) target = $region25
    $region24: #{fixed_point_forward.1} parent=1 // pred_region
      %s150 = ssub.s32 16, 16
      %151 = vsyncadd [#allocation7], %s150
      %s153 = sshll.u32 [#allocation6], 4
      %s154 = int_to_ptr.vmem [resolvable:$true] %s153
      %156 = dma.vmem_to_hbm [thread:$0]  %s154, 16, %s4, [#allocation7]
    $region25: #{fixed_point_forward.1} parent=1 // pred_fallthru
      _
    // Predicated region
    $region26: #{fixed_point_forward.1} parent=1 // pred_check
      _
    $region27: #{fixed_point_forward.1} parent=1 // pred_check_branch
      %158 = sbr.rel (0) target = $region29
    $region28: #{fixed_point_forward.1} parent=1 // pred_region
      %159 = dma.done [#allocation4], 128
    $region29: #{fixed_point_forward.1} parent=1 // pred_fallthru
      _
    // Predicated region
    $region30: #{fixed_point_forward.1} parent=1 // pred_check
      _
    $region31: #{fixed_point_forward.1} parent=1 // pred_check_branch
      %161 = sbr.rel (0) target = $region33
    $region32: #{fixed_point_forward.1} parent=1 // pred_region
      %162 = dma.done [#allocation7], 16
    $region33: #{fixed_point_forward.1} parent=1 // pred_fallthru
      _
    %163 = vsyncpa [#allocation3], 1
    %164 = vsyncpa [#allocation4], 1
    %165 = vsyncpa [#allocation7], 1

</llo_original>
